<compile_context>
chip_gen: v6e
topology: v6e:2x2x1
jax: 0.10.0
libtpu: 0.0.40
codegen_flags: <defaults>
</compile_context>

<pallas_src>
import math

import jax
import jax.numpy as jnp
from jax import lax
from jax.experimental import pallas as pl
from jax.experimental.pallas import tpu as pltpu

_LANE = 128
_MiB = 1 << 20


def _tpu_config():
    """Trace-time hardware query -> (vmem_capacity_bytes, is_v5, is_megacore).

    Falls back to conservative values (64 MiB VMEM, f32 compute allowed,
    treat-as-megacore) if the query fails.
    """
    vmem_cap = 64 * _MiB
    is_v5 = False
    is_megacore = True
    try:
        info = pltpu.get_tpu_info()
        vmem_cap = int(getattr(info, "vmem_capacity_bytes", vmem_cap))
    except Exception:
        pass
    try:
        kind = jax.devices()[0].device_kind.lower()
        is_v5 = "v5" in kind
        # chips with 2 TensorCores sharing the grid (v4 / v5p / v7x)
        is_megacore = ("v7" in kind) or ("v4" in kind) or ("v5p" in kind)
    except Exception:
        pass
    return vmem_cap, is_v5, is_megacore


def _pflu_math(x):
    s = x * lax.rsqrt(x * x + 1.0)
    return x * (1.0 + s) * 0.5


def _make_pflu_kernel(compute_dtype):
    def kernel(x_ref, o_ref):
        x = x_ref[...].astype(compute_dtype)
        # rsqrt goes to the EUP (a free slot vs. the HBM roofline)
        o_ref[...] = _pflu_math(x).astype(o_ref.dtype)

    return kernel


def pflu(x: jax.Array, *, target_block_bytes: int | None = None) -> jax.Array:
    """Apply PFLU elementwise to an arbitrarily-shaped array via Pallas."""
    orig_shape = x.shape
    orig_dtype = x.dtype
    n = math.prod(orig_shape) if orig_shape else 1
    if n == 0:
        return x

    itemsize = jnp.dtype(orig_dtype).itemsize
    # packed-sublane multiple: f32 -> 8, bf16 -> 16, int8/fp8 -> 32
    sub = max(8, 32 // itemsize)

    vmem_cap, is_v5, is_megacore = _tpu_config()

    # bf16-native compute on v6e/v7x for bf16 inputs; f32 everywhere else
    # (v5e has no bf16 VPU/EUP; f32 compute is hidden under its 0.8 TB/s roofline).
    if orig_dtype == jnp.bfloat16 and not is_v5:
        compute_dtype = jnp.bfloat16
    else:
        compute_dtype = jnp.float32

    # Generation-aware block target & scoped-VMEM limit:
    #   128 MiB VMEM (v5e/v6e): ~16 MiB blocks -> 2 arrays x 2 bufs = 64 MiB
    #   64 MiB VMEM  (v7x/TC) :  ~8 MiB blocks -> 32 MiB total
    if target_block_bytes is None:
        target_block_bytes = 16 * _MiB if vmem_cap >= 96 * _MiB else 8 * _MiB
    vmem_limit = min(int(vmem_cap * 3 // 4), 4 * target_block_bytes + 8 * _MiB)

    def _block_rows(rows):
        tr = max(sub, (target_block_bytes // (_LANE * itemsize)) // sub * sub)
        # never use a block (much) larger than the array's row extent
        tr = min(tr, pl.cdiv(rows, sub) * sub)
        if is_megacore:
            # Guarantee >= 4 (ideally 8) grid steps so each of the 2 TCs gets
            # >= 2 blocks and can double-buffer — but only while a step stays
            # >= ~1 MiB; tiny arrays are not force-split.
            for min_steps in (8, 4):
                cap = ((rows // min_steps) // sub) * sub
                if cap * _LANE * itemsize >= _MiB:
                    tr = min(tr, cap)
                    break
        return tr

    def _run(slab, rows):
        tr = _block_rows(rows)
        grid = (pl.cdiv(rows, tr),)  # last block may be partial; Pallas masks it
        return pl.pallas_call(
            _make_pflu_kernel(compute_dtype),
            out_shape=jax.ShapeDtypeStruct((rows, _LANE), orig_dtype),
            grid_spec=pltpu.PrefetchScalarGridSpec(
                num_scalar_prefetch=0,
                grid=grid,
                in_specs=[pl.BlockSpec((tr, _LANE), lambda i: (i, 0))],
                out_specs=pl.BlockSpec((tr, _LANE), lambda i: (i, 0)),
            ),
            compiler_params=pltpu.CompilerParams(
                dimension_semantics=("parallel",),
                vmem_limit_bytes=vmem_limit,
            ),
            cost_estimate=pl.CostEstimate(
                flops=6 * rows * _LANE,
                transcendentals=rows * _LANE,
                bytes_accessed=2 * rows * _LANE * itemsize,
            ),
        )(slab)

    flat = x.reshape(-1)
    tail = n % _LANE
    rows = n // _LANE

    if tail == 0:
        out = _run(flat.reshape(rows, _LANE), rows)
        return out.reshape(orig_shape)

    # Ragged path: kernel on the 128-aligned prefix; the <128-element tail is
    # one vreg of plain XLA elementwise work (a full-array pad + unaligned
    # slice would each materialize an extra whole-array copy).
    parts = []
    if rows > 0:
        n_main = rows * _LANE
        prefix = lax.slice(flat, (0,), (n_main,)).reshape(rows, _LANE)
        parts.append(_run(prefix, rows).reshape(-1))
    tail_x = lax.slice(flat, (rows * _LANE,), (n,)).astype(compute_dtype)
    parts.append(_pflu_math(tail_x).astype(orig_dtype))
    return jnp.concatenate(parts).reshape(orig_shape)


def _pflu_ref(x):
    xf = x.astype(jnp.float32)
    s = xf * lax.rsqrt(xf * xf + 1.0)
    return (xf * (1.0 + s) * 0.5).astype(x.dtype)


if __name__ == "__main__":
    key = jax.random.PRNGKey(0)
    # PyTorch NCHW convention: (batch=2, channels=4, H=16, W=16)
    x = jax.random.normal(key, (2, 4, 16, 16), dtype=jnp.float32)

    y = pflu(x)
    y = jax.block_until_ready(y)

    y_ref = _pflu_ref(x)
    assert y.shape == x.shape and y.dtype == x.dtype
    assert jnp.allclose(y, y_ref, atol=1e-5, rtol=1e-5)

    print("KERNEL_OK")
</pallas_src>

<mosaic_0001>
module attributes {stable_mosaic.version = 11 : i64} {
  func.func @kernel(%arg0: i32, %arg1: memref<16x128xf32, #tpu.memory_space<vmem>>, %arg2: memref<16x128xf32, #tpu.memory_space<vmem>>) attributes {dimension_semantics = [#tpu.dimension_semantics<parallel>], iteration_bounds = array<i64: 1>, scalar_prefetch = 0 : i64, scratch_operands = 0 : i64, tpu.core_type = #tpu.core_type<tc>, window_params = [{transform_indices = @transform_0, window_bounds = array<i64: 16, 128>}, {transform_indices = @transform_1, window_bounds = array<i64: 16, 128>}]} {
    %c0 = arith.constant 0 : index
    %c0_0 = arith.constant 0 : index
    %0 = vector.load %arg1[%c0, %c0_0] : memref<16x128xf32, #tpu.memory_space<vmem>>, vector<16x128xf32>
    %1 = arith.mulf %0, %0 : vector<16x128xf32>
    %cst = arith.constant 1.000000e+00 : f32
    %2 = vector.broadcast %cst : f32 to vector<16x128xf32>
    %3 = arith.addf %1, %2 : vector<16x128xf32>
    %4 = math.rsqrt %3 : vector<16x128xf32>
    %5 = arith.mulf %0, %4 : vector<16x128xf32>
    %cst_1 = arith.constant 1.000000e+00 : f32
    %6 = vector.broadcast %cst_1 : f32 to vector<16x128xf32>
    %7 = arith.addf %6, %5 : vector<16x128xf32>
    %8 = arith.mulf %0, %7 : vector<16x128xf32>
    %cst_2 = arith.constant 5.000000e-01 : f32
    %9 = vector.broadcast %cst_2 : f32 to vector<16x128xf32>
    %10 = arith.mulf %8, %9 : vector<16x128xf32>
    %c0_3 = arith.constant 0 : index
    %c0_4 = arith.constant 0 : index
    %11 = vector.load %arg2[%c0_3, %c0_4] : memref<16x128xf32, #tpu.memory_space<vmem>>, vector<16x128xf32>
    tpu.vector_store %arg2[%c0_3, %c0_4], %10 {strides = array<i32>} : memref<16x128xf32, #tpu.memory_space<vmem>>, vector<16x128xf32>,
    return
  }
  func.func @transform_0(%arg0: i32) -> (i32, i32) {
    %c0_i32 = arith.constant 0 : i32
    %c0_i32_0 = arith.constant 0 : i32
    return %arg0, %c0_i32 : i32, i32
  }
  func.func @transform_1(%arg0: i32) -> (i32, i32) {
    %c0_i32 = arith.constant 0 : i32
    %c0_i32_0 = arith.constant 0 : i32
    return %arg0, %c0_i32 : i32, i32
  }
}

</mosaic_0001>

<llo_original>
// kernel: tpu_custom_call.1
$region0: #{tpu_custom_call.1}
  #allocation0 [shape = 'u32[]', space=smem, size = 0x4, offset = 0x4, fixed_abs, tag = 'smem constant byte address 0x4 - core index']
  #allocation1 [shape = 'u32[144,128]{1,0:T(1,128)}', space=vmem, size = 0x12000, scoped, tag = 'internal scratch']
  %s0 = inlined_call_operand.hbm [shape: f32[16,128], index: 0, kind: input, shape index: {}]
  %s1 = inlined_call_operand.hbm [shape: f32[16,128], index: 1, kind: output, shape index: {}]
  %s2 = sld [smem:[#allocation0]]
  $region18: #{tpu_custom_call.1} parent=0
    _
  %s4 = ssub.s32 1, %s2
  %s5 = scalar_select 0, %s4, %s2
  $region1: #{tpu_custom_call.1} parent=0
    #allocation2 [shape = 'u8[8192]{0}', space=vmem, size = 0x2000, scoped, tag = 'input window, operand 0, single buffered']
    #allocation3 [shape = 's32[1]{0}', space=sflag, size = 0x4, scoped, tag = 'scoped memory for tpu_custom_call.1']
    #allocation4 [shape = 's32[1]{0}', space=sflag, size = 0x4, scoped, tag = 'scoped memory for tpu_custom_call.1']
    #allocation5 [shape = 'u8[8192]{0}', space=vmem, size = 0x2000, scoped, tag = 'output window, operand 0, single buffered']
    %6 = vsyncpa [#allocation3], 0
    %7 = vsyncpa [#allocation4], 0
    // Predicated region
    $region2: #{tpu_custom_call.1} parent=1 // pred_check
      _
    $region3: #{tpu_custom_call.1} parent=1 // pred_check_branch
      %9 = sbr.rel (0) target = $region5
    $region4: #{tpu_custom_call.1} parent=1 // pred_region
      %s11 = ssub.s32 256, 256
      %12 = vsyncadd [#allocation3], %s11
      %s13 = sshll.u32 [#allocation2], 4
      %s14 = int_to_ptr.vmem [resolvable:$true] %s13
      %19 = dma.hbm_to_vmem [thread:$0]  %s0, 256, %s14, [#allocation3], 128, 128, 8
    $region5: #{tpu_custom_call.1} parent=1 // pred_fallthru
      _
    // Predicated region
    $region6: #{tpu_custom_call.1} parent=1 // pred_check
      _
    $region7: #{tpu_custom_call.1} parent=1 // pred_check_branch
      %21 = sbr.rel (0) target = $region9
    $region8: #{tpu_custom_call.1} parent=1 // pred_region
      %22 = dma.done [#allocation3], 256
    $region9: #{tpu_custom_call.1} parent=1 // pred_fallthru
      _
    %v23 = vld [vmem:[#allocation2] sm:$0xff]
    %v24 = vld [vmem:[#allocation2 + $0x8] sm:$0xff]
    %v25 = vmul.f32 %v23, %v23
    %v26 = vmul.f32 %v24, %v24
    %v27 = vadd.f32 %v25, 1.0
    %v28 = vadd.f32 %v26, 1.0
    %v29 = vrsqrt.pop %v27
    %v30 = vrsqrt.pop %v28
    %v31 = vmul.f32 %v23, %v29
    %v32 = vmul.f32 %v24, %v30
    %v33 = vadd.f32 %v31, 1.0
    %v34 = vadd.f32 %v32, 1.0
    %v35 = vmul.f32 %v23, %v33
    %v36 = vmul.f32 %v24, %v34
    %v37 = vmul.f32 %v35, 0.5
    %v38 = vmul.f32 %v36, 0.5
    %39 = vst [vmem:[#allocation5] sm:$0xff] %v37
    %40 = vst [vmem:[#allocation5 + $0x8] sm:$0xff] %v38
    // Predicated region
    $region10: #{tpu_custom_call.1} parent=1 // pred_check
      _
    $region11: #{tpu_custom_call.1} parent=1 // pred_check_branch
      %42 = sbr.rel (0) target = $region13
    $region12: #{tpu_custom_call.1} parent=1 // pred_region
      %s44 = ssub.s32 256, 256
      %45 = vsyncadd [#allocation4], %s44
      %s46 = sshll.u32 [#allocation5], 4
      %s47 = int_to_ptr.vmem [resolvable:$true] %s46
      %52 = dma.vmem_to_hbm [thread:$0]  %s47, 256, %s1, [#allocation4], 128, 128, 8
    $region13: #{tpu_custom_call.1} parent=1 // pred_fallthru
      _
    // Predicated region
    $region14: #{tpu_custom_call.1} parent=1 // pred_check
      _
    $region15: #{tpu_custom_call.1} parent=1 // pred_check_branch
      %54 = sbr.rel (0) target = $region17
    $region16: #{tpu_custom_call.1} parent=1 // pred_region
      %55 = dma.done [#allocation4], 256
    $region17: #{tpu_custom_call.1} parent=1 // pred_fallthru
      _
    %56 = vsyncpa [#allocation3], 1
    %57 = vsyncpa [#allocation4], 1

</llo_original>
